<compile_context>
chip_gen: v6e
topology: v6e:2x2x1
jax: 0.10.0
libtpu: 0.0.40
codegen_flags: <defaults>
</compile_context>

<pallas_src>
from functools import partial

import numpy as np
import jax
import jax.numpy as jnp
from jax.experimental import pallas as pl
from jax.experimental.pallas import tpu as pltpu

LANES = 128


def _ssloss_partials_kernel(R, TR, C, P, K_total, Kp,
                            pred_ref, targ_ref, out_ref,
                            sw_ref, sd_ref, st_ref):
    """Grid = (N, P, Kp); emits per-(n, p) lane-shaped partial sums:
       out[0] = sum((p-t)^2 * t), out[1] = sum((p-t)^2), out[2] = sum(t)."""
    pp = pl.program_id(1)
    k = pl.program_id(2)
    j = pp * Kp + k                         # global row-tile index

    @pl.when(k == 0)
    def _():
        sw_ref[...] = jnp.zeros_like(sw_ref)
        sd_ref[...] = jnp.zeros_like(sd_ref)
        st_ref[...] = jnp.zeros_like(st_ref)

    def accumulate(masked):
        p = pred_ref[...].astype(jnp.float32)   # (C, TR, 128), cast in-register
        t = targ_ref[...].astype(jnp.float32)
        if masked:
            # Only the globally-last (ragged) row tile pays for this mask.
            row = jax.lax.broadcasted_iota(jnp.int32, (TR, LANES), 0)
            valid = (j * TR + row) < R          # broadcasts over C
            p = jnp.where(valid, p, 0.0)
            t = jnp.where(valid, t, 0.0)
        d2 = (p - t) * (p - t)
        # Lane-shaped partials: sublane (row) reduce only; the 128-lane reduce
        # happens once in the JAX epilogue.  No (1-t) product in the hot loop.
        sw_ref[...] += jnp.sum(d2 * t, axis=1)
        sd_ref[...] += jnp.sum(d2, axis=1)
        st_ref[...] += jnp.sum(t, axis=1)

    ragged = (R % TR) != 0                      # last tile has rows past R
    has_dead = (P * Kp) > K_total               # last split may have idle steps

    if not ragged and not has_dead:
        accumulate(masked=False)
    else:
        steady_limit = K_total - 1 if ragged else K_total
        if steady_limit > 0:
            @pl.when(j < steady_limit)
            def _():
                accumulate(masked=False)
        if ragged:
            @pl.when(j == K_total - 1)
            def _():
                accumulate(masked=True)
        # j >= K_total: dead step (clamped DMA, no accumulation).

    @pl.when(k == Kp - 1)
    def _():
        out_ref[0, :, :] = sw_ref[...]
        out_ref[1, :, :] = sd_ref[...]
        out_ref[2, :, :] = st_ref[...]


def _finalize(sw, sd, st, n_elems, num_classes):
    """Per-class division/weighting; sw/sd/st are (N, C) f32 sums."""
    smooth = jnp.float32(1.0)
    sv = sd - sw                                # sum((p-t)^2 * (1-t))
    s1 = sw / (smooth + st)
    s2 = sv / (smooth + (jnp.float32(n_elems) - st))
    per_class = 0.05 * s1 + 0.95 * s2
    return per_class.sum(axis=-1) / num_classes


def _ssloss_fused_jax(pred, target):
    """Rare ragged-S path (S % 128 != 0): a single fused XLA reduction is the
    lowest-traffic option (any Pallas route adds a full HBM pad/slice copy)."""
    N, C = pred.shape[:2]
    S = int(np.prod(pred.shape[2:]))
    p = pred.reshape(N, C, S).astype(jnp.float32)
    t = target.reshape(N, C, S).astype(jnp.float32)
    d2 = (p - t) * (p - t)
    return _finalize((d2 * t).sum(-1), d2.sum(-1), t.sum(-1), S, C)


def ssloss(pred, target, *, block_cap_bytes=2 * 1024 * 1024, min_steps=4):
    assert pred.shape == target.shape and pred.ndim == 5, "expect (N, C, D, H, W)"
    N, C = pred.shape[:2]
    S = int(np.prod(pred.shape[2:]))

    if S % LANES != 0:
        # TODO(synk): a zero-copy Pallas path for S % 128 != 0 needs a
        # flat-block kernel with cross-lane reduces; fused JAX is cheaper.
        return _ssloss_fused_jax(pred, target)

    R = S // LANES
    p4 = pred.reshape(N, C, R, LANES)           # zero-copy views, native dtype
    t4 = target.reshape(N, C, R, LANES)

    # v7x has 2 TensorCores: when N == 1 split the row axis 2-way so both get
    # work (same total work on single-core v5e/v6e).
    P = 2 if (N == 1 and R >= 16) else 1

    # Row tile: (a) <= ~2 MiB of f32 compute per input block (also bounds
    # in-kernel f32 temporaries for bf16 inputs), (b) >= min_steps pipeline
    # steps per (n, p) split so DMA and compute overlap, (c) multiple of 8.
    if R <= 8:
        TR = R
    else:
        tr_cap_bytes = max(8, (block_cap_bytes // (C * LANES * 4)) // 8 * 8)
        tr_cap_steps = max(8, (R // (min_steps * P)) // 8 * 8)
        TR = max(8, min(tr_cap_bytes, tr_cap_steps))
    K_total = -(-R // TR)
    Kp = -(-K_total // P)

    # Generation-aware VMEM limit: >= 32 MiB (v5e scoped default is 16 MiB),
    # never above physical VMEM (64 MiB on v7x).  Working set here is ~20 MiB.
    try:
        vmem_cap = int(pltpu.get_tpu_info().vmem_capacity_bytes)
    except Exception:
        vmem_cap = 64 * 1024 * 1024
    vmem_limit = int(min(vmem_cap, 32 * 1024 * 1024))

    def in_map(n, pp, k):
        # Clamp dead steps of the last row split onto a valid block.
        return (n, 0, jnp.minimum(pp * Kp + k, K_total - 1), 0)

    parts = pl.pallas_call(
        partial(_ssloss_partials_kernel, R, TR, C, P, K_total, Kp),
        out_shape=jax.ShapeDtypeStruct((N, P, 3, C, LANES), jnp.float32),
        grid_spec=pltpu.PrefetchScalarGridSpec(
            num_scalar_prefetch=0,
            grid=(N, P, Kp),
            in_specs=[
                pl.BlockSpec((None, C, TR, LANES), in_map),
                pl.BlockSpec((None, C, TR, LANES), in_map),
            ],
            out_specs=pl.BlockSpec((None, None, 3, C, LANES),
                                   lambda n, pp, k: (n, pp, 0, 0, 0)),
            scratch_shapes=[
                pltpu.VMEM((C, LANES), jnp.float32),   # sum((p-t)^2 * t)
                pltpu.VMEM((C, LANES), jnp.float32),   # sum((p-t)^2)
                pltpu.VMEM((C, LANES), jnp.float32),   # sum(t)
            ],
        ),
        compiler_params=pltpu.CompilerParams(
            dimension_semantics=("parallel", "parallel", "arbitrary"),
            vmem_limit_bytes=vmem_limit,
        ),
    )(p4, t4)

    sums = parts.sum(axis=(1, 4))               # combine splits + lanes -> (N, 3, C)
    return _finalize(sums[:, 0], sums[:, 1], sums[:, 2], S, C)


def ssloss_ref(pred, target):
    # pure-JAX reference mirroring the PyTorch forward exactly
    smooth = 1.0
    C = pred.shape[1]
    loss = 0.0
    for i in range(C):
        p = pred[:, i].astype(jnp.float32)
        t = target[:, i].astype(jnp.float32)
        d2 = (p - t) ** 2
        s1 = (d2 * t).sum(axis=(1, 2, 3)) / (smooth + t.sum(axis=(1, 2, 3)))
        s2 = (d2 * (1 - t)).sum(axis=(1, 2, 3)) / (smooth + (1 - t).sum(axis=(1, 2, 3)))
        loss = loss + 0.05 * s1 + 0.95 * s2
    return loss / C


def _check(name, out, ref, rtol=1e-4, atol=1e-5):
    out = np.asarray(jax.block_until_ready(out))
    ref = np.asarray(ref)
    assert out.shape == ref.shape, (name, out.shape, ref.shape)
    assert np.allclose(out, ref, rtol=rtol, atol=atol), (name, out, ref)


if __name__ == "__main__":
    key = jax.random.PRNGKey(0)
    ks = jax.random.split(key, 10)

    # 1) Small aligned volume (single row tile, P=1).
    shape = (2, 3, 4, 8, 8)                              # S = 256
    pred = jax.random.uniform(ks[0], shape, dtype=jnp.float32)
    targ = (jax.random.uniform(ks[1], shape) > 0.5).astype(jnp.float32)
    _check("small", ssloss(pred, targ), ssloss_ref(pred, targ))

    # 2) Multi row-tile with ragged tail (R=10, TR=8): steady tiles unmasked,
    #    only the last tile runs the row mask.
    shape = (2, 3, 20, 8, 8)                             # S = 1280
    pred = jax.random.uniform(ks[2], shape, dtype=jnp.float32)
    targ = (jax.random.uniform(ks[3], shape) > 0.5).astype(jnp.float32)
    _check("ragged_rows", ssloss(pred, targ), ssloss_ref(pred, targ))

    # 3) N == 1 -> 2-way parallel row split (both v7x cores); soft targets
    #    exercise the sum(d2) - sum(d2*t) derivation.
    shape = (1, 3, 16, 16, 128)                          # S = 32768, R = 256
    pred = jax.random.uniform(ks[4], shape, dtype=jnp.float32)
    targ = jax.random.uniform(ks[5], shape, dtype=jnp.float32)
    _check("split_soft", ssloss(pred, targ), ssloss_ref(pred, targ))

    # 4) Native bf16 streaming (no wrapper-side cast; f32 accumulation).
    shape = (2, 3, 8, 16, 16)                            # S = 2048
    pred = jax.random.uniform(ks[6], shape).astype(jnp.bfloat16)
    targ = (jax.random.uniform(ks[7], shape) > 0.5).astype(jnp.bfloat16)
    _check("bf16", ssloss(pred, targ), ssloss_ref(pred, targ), rtol=1e-3, atol=1e-4)

    # 5) S % 128 != 0 -> fused-JAX fallback (no full-array pad).
    shape = (2, 3, 5, 8, 8)                              # S = 320
    pred = jax.random.uniform(ks[8], shape, dtype=jnp.float32)
    targ = (jax.random.uniform(ks[9], shape) > 0.5).astype(jnp.float32)
    _check("ragged_S", ssloss(pred, targ), ssloss_ref(pred, targ))

    print("KERNEL_OK")
</pallas_src>

<mosaic_0001>
module attributes {stable_mosaic.version = 11 : i64} {
  func.func @_ssloss_partials_kernel(%arg0: i32, %arg1: i32, %arg2: i32, %arg3: memref<1x3x2x128xf32, #tpu.memory_space<vmem>>, %arg4: memref<1x3x2x128xf32, #tpu.memory_space<vmem>>, %arg5: memref<1x1x3x3x128xf32, #tpu.memory_space<vmem>>, %arg6: memref<3x128xf32, #tpu.memory_space<vmem>>, %arg7: memref<3x128xf32, #tpu.memory_space<vmem>>, %arg8: memref<3x128xf32, #tpu.memory_space<vmem>>) attributes {dimension_semantics = [#tpu.dimension_semantics<parallel>, #tpu.dimension_semantics<parallel>, #tpu.dimension_semantics<arbitrary>], iteration_bounds = array<i64: 2, 1, 1>, scalar_prefetch = 0 : i64, scratch_operands = 3 : i64, tpu.core_type = #tpu.core_type<tc>, window_params = [{transform_indices = @transform_0, window_bounds = array<i64: 1, 3, 2, 128>}, {transform_indices = @transform_1, window_bounds = array<i64: 1, 3, 2, 128>}, {transform_indices = @transform_2, window_bounds = array<i64: 1, 1, 3, 3, 128>}]} {
    %c0_i32 = arith.constant 0 : i32
    %0 = arith.cmpi eq, %arg2, %c0_i32 : i32
    %1 = arith.extui %0 : i1 to i32
    %c0_i32_0 = arith.constant 0 : i32
    %2 = arith.cmpi ne, %1, %c0_i32_0 : i32
    scf.if %2 {
      %cst_24 = arith.constant 0.000000e+00 : f32
      %26 = vector.broadcast %cst_24 : f32 to vector<3x128xf32>
      %c0_25 = arith.constant 0 : index
      %c0_26 = arith.constant 0 : index
      %27 = vector.load %arg6[%c0_25, %c0_26] : memref<3x128xf32, #tpu.memory_space<vmem>>, vector<3x128xf32>
      tpu.vector_store %arg6[%c0_25, %c0_26], %26 {strides = array<i32>} : memref<3x128xf32, #tpu.memory_space<vmem>>, vector<3x128xf32>,
      %cst_27 = arith.constant 0.000000e+00 : f32
      %28 = vector.broadcast %cst_27 : f32 to vector<3x128xf32>
      %c0_28 = arith.constant 0 : index
      %c0_29 = arith.constant 0 : index
      %29 = vector.load %arg7[%c0_28, %c0_29] : memref<3x128xf32, #tpu.memory_space<vmem>>, vector<3x128xf32>
      tpu.vector_store %arg7[%c0_28, %c0_29], %28 {strides = array<i32>} : memref<3x128xf32, #tpu.memory_space<vmem>>, vector<3x128xf32>,
      %cst_30 = arith.constant 0.000000e+00 : f32
      %30 = vector.broadcast %cst_30 : f32 to vector<3x128xf32>
      %c0_31 = arith.constant 0 : index
      %c0_32 = arith.constant 0 : index
      %31 = vector.load %arg8[%c0_31, %c0_32] : memref<3x128xf32, #tpu.memory_space<vmem>>, vector<3x128xf32>
      tpu.vector_store %arg8[%c0_31, %c0_32], %30 {strides = array<i32>} : memref<3x128xf32, #tpu.memory_space<vmem>>, vector<3x128xf32>,
    } else {
    }
    %c0 = arith.constant 0 : index
    %c0_1 = arith.constant 0 : index
    %c0_2 = arith.constant 0 : index
    %c0_3 = arith.constant 0 : index
    %3 = vector.load %arg3[%c0, %c0_1, %c0_2, %c0_3] : memref<1x3x2x128xf32, #tpu.memory_space<vmem>>, vector<1x3x2x128xf32>
    %4 = vector.shape_cast %3 : vector<1x3x2x128xf32> to vector<3x2x128xf32>
    %c0_4 = arith.constant 0 : index
    %c0_5 = arith.constant 0 : index
    %c0_6 = arith.constant 0 : index
    %c0_7 = arith.constant 0 : index
    %5 = vector.load %arg4[%c0_4, %c0_5, %c0_6, %c0_7] : memref<1x3x2x128xf32, #tpu.memory_space<vmem>>, vector<1x3x2x128xf32>
    %6 = vector.shape_cast %5 : vector<1x3x2x128xf32> to vector<3x2x128xf32>
    %7 = arith.subf %4, %6 : vector<3x2x128xf32>
    %8 = arith.subf %4, %6 : vector<3x2x128xf32>
    %9 = arith.mulf %7, %8 : vector<3x2x128xf32>
    %c0_8 = arith.constant 0 : index
    %c0_9 = arith.constant 0 : index
    %10 = vector.load %arg6[%c0_8, %c0_9] : memref<3x128xf32, #tpu.memory_space<vmem>>, vector<3x128xf32>
    %11 = arith.mulf %9, %6 : vector<3x2x128xf32>
    %cst = arith.constant dense<0.000000e+00> : vector<3x128xf32>
    %12 = vector.multi_reduction <add>, %11, %cst [1] : vector<3x2x128xf32> to vector<3x128xf32>
    %13 = arith.addf %10, %12 : vector<3x128xf32>
    %c0_10 = arith.constant 0 : index
    %c0_11 = arith.constant 0 : index
    %14 = vector.load %arg6[%c0_10, %c0_11] : memref<3x128xf32, #tpu.memory_space<vmem>>, vector<3x128xf32>
    tpu.vector_store %arg6[%c0_10, %c0_11], %13 {strides = array<i32>} : memref<3x128xf32, #tpu.memory_space<vmem>>, vector<3x128xf32>,
    %c0_12 = arith.constant 0 : index
    %c0_13 = arith.constant 0 : index
    %15 = vector.load %arg7[%c0_12, %c0_13] : memref<3x128xf32, #tpu.memory_space<vmem>>, vector<3x128xf32>
    %cst_14 = arith.constant dense<0.000000e+00> : vector<3x128xf32>
    %16 = vector.multi_reduction <add>, %9, %cst_14 [1] : vector<3x2x128xf32> to vector<3x128xf32>
    %17 = arith.addf %15, %16 : vector<3x128xf32>
    %c0_15 = arith.constant 0 : index
    %c0_16 = arith.constant 0 : index
    %18 = vector.load %arg7[%c0_15, %c0_16] : memref<3x128xf32, #tpu.memory_space<vmem>>, vector<3x128xf32>
    tpu.vector_store %arg7[%c0_15, %c0_16], %17 {strides = array<i32>} : memref<3x128xf32, #tpu.memory_space<vmem>>, vector<3x128xf32>,
    %c0_17 = arith.constant 0 : index
    %c0_18 = arith.constant 0 : index
    %19 = vector.load %arg8[%c0_17, %c0_18] : memref<3x128xf32, #tpu.memory_space<vmem>>, vector<3x128xf32>
    %cst_19 = arith.constant dense<0.000000e+00> : vector<3x128xf32>
    %20 = vector.multi_reduction <add>, %6, %cst_19 [1] : vector<3x2x128xf32> to vector<3x128xf32>
    %21 = arith.addf %19, %20 : vector<3x128xf32>
    %c0_20 = arith.constant 0 : index
    %c0_21 = arith.constant 0 : index
    %22 = vector.load %arg8[%c0_20, %c0_21] : memref<3x128xf32, #tpu.memory_space<vmem>>, vector<3x128xf32>
    tpu.vector_store %arg8[%c0_20, %c0_21], %21 {strides = array<i32>} : memref<3x128xf32, #tpu.memory_space<vmem>>, vector<3x128xf32>,
    %c0_i32_22 = arith.constant 0 : i32
    %23 = arith.cmpi eq, %arg2, %c0_i32_22 : i32
    %24 = arith.extui %23 : i1 to i32
    %c0_i32_23 = arith.constant 0 : i32
    %25 = arith.cmpi ne, %24, %c0_i32_23 : i32
    scf.if %25 {
      %c0_24 = arith.constant 0 : index
      %c0_25 = arith.constant 0 : index
      %26 = vector.load %arg6[%c0_24, %c0_25] : memref<3x128xf32, #tpu.memory_space<vmem>>, vector<3x128xf32>
      %c0_26 = arith.constant 0 : index
      %c0_27 = arith.constant 0 : index
      %c0_28 = arith.constant 0 : index
      %c0_29 = arith.constant 0 : index
      %c0_30 = arith.constant 0 : index
      %27 = vector.load %arg5[%c0_26, %c0_27, %c0_28, %c0_29, %c0_30] : memref<1x1x3x3x128xf32, #tpu.memory_space<vmem>>, vector<1x1x1x3x128xf32>
      %28 = vector.shape_cast %27 : vector<1x1x1x3x128xf32> to vector<3x128xf32>
      %29 = vector.shape_cast %26 : vector<3x128xf32> to vector<1x1x1x3x128xf32>
      tpu.vector_store %arg5[%c0_26, %c0_27, %c0_28, %c0_29, %c0_30], %29 {strides = array<i32>} : memref<1x1x3x3x128xf32, #tpu.memory_space<vmem>>, vector<1x1x1x3x128xf32>,
      %c0_31 = arith.constant 0 : index
      %c0_32 = arith.constant 0 : index
      %30 = vector.load %arg7[%c0_31, %c0_32] : memref<3x128xf32, #tpu.memory_space<vmem>>, vector<3x128xf32>
      %c0_33 = arith.constant 0 : index
      %c0_34 = arith.constant 0 : index
      %c1 = arith.constant 1 : index
      %c0_35 = arith.constant 0 : index
      %c0_36 = arith.constant 0 : index
      %31 = vector.load %arg5[%c0_33, %c0_34, %c1, %c0_35, %c0_36] : memref<1x1x3x3x128xf32, #tpu.memory_space<vmem>>, vector<1x1x1x3x128xf32>
      %32 = vector.shape_cast %31 : vector<1x1x1x3x128xf32> to vector<3x128xf32>
      %33 = vector.shape_cast %30 : vector<3x128xf32> to vector<1x1x1x3x128xf32>
      tpu.vector_store %arg5[%c0_33, %c0_34, %c1, %c0_35, %c0_36], %33 {strides = array<i32>} : memref<1x1x3x3x128xf32, #tpu.memory_space<vmem>>, vector<1x1x1x3x128xf32>,
      %c0_37 = arith.constant 0 : index
      %c0_38 = arith.constant 0 : index
      %34 = vector.load %arg8[%c0_37, %c0_38] : memref<3x128xf32, #tpu.memory_space<vmem>>, vector<3x128xf32>
      %c0_39 = arith.constant 0 : index
      %c0_40 = arith.constant 0 : index
      %c2 = arith.constant 2 : index
      %c0_41 = arith.constant 0 : index
      %c0_42 = arith.constant 0 : index
      %35 = vector.load %arg5[%c0_39, %c0_40, %c2, %c0_41, %c0_42] : memref<1x1x3x3x128xf32, #tpu.memory_space<vmem>>, vector<1x1x1x3x128xf32>
      %36 = vector.shape_cast %35 : vector<1x1x1x3x128xf32> to vector<3x128xf32>
      %37 = vector.shape_cast %34 : vector<3x128xf32> to vector<1x1x1x3x128xf32>
      tpu.vector_store %arg5[%c0_39, %c0_40, %c2, %c0_41, %c0_42], %37 {strides = array<i32>} : memref<1x1x3x3x128xf32, #tpu.memory_space<vmem>>, vector<1x1x1x3x128xf32>,
    } else {
    }
    return
  }
  func.func @transform_0(%arg0: i32, %arg1: i32, %arg2: i32) -> (i32, i32, i32, i32) {
    %c1_i32 = arith.constant 1 : i32
    %0 = arith.muli %arg1, %c1_i32 : i32
    %1 = arith.addi %0, %arg2 : i32
    %c0_i32 = arith.constant 0 : i32
    %2 = arith.minsi %1, %c0_i32 : i32
    %c0_i32_0 = arith.constant 0 : i32
    %c0_i32_1 = arith.constant 0 : i32
    %c0_i32_2 = arith.constant 0 : i32
    return %arg0, %c0_i32_0, %2, %c0_i32_1 : i32, i32, i32, i32
  }
  func.func @transform_1(%arg0: i32, %arg1: i32, %arg2: i32) -> (i32, i32, i32, i32) {
    %c1_i32 = arith.constant 1 : i32
    %0 = arith.muli %arg1, %c1_i32 : i32
    %1 = arith.addi %0, %arg2 : i32
    %c0_i32 = arith.constant 0 : i32
    %2 = arith.minsi %1, %c0_i32 : i32
    %c0_i32_0 = arith.constant 0 : i32
    %c0_i32_1 = arith.constant 0 : i32
    %c0_i32_2 = arith.constant 0 : i32
    return %arg0, %c0_i32_0, %2, %c0_i32_1 : i32, i32, i32, i32
  }
  func.func @transform_2(%arg0: i32, %arg1: i32, %arg2: i32) -> (i32, i32, i32, i32, i32) {
    %c0_i32 = arith.constant 0 : i32
    %c0_i32_0 = arith.constant 0 : i32
    %c0_i32_1 = arith.constant 0 : i32
    %c0_i32_2 = arith.constant 0 : i32
    return %arg0, %arg1, %c0_i32, %c0_i32_0, %c0_i32_1 : i32, i32, i32, i32, i32
  }
}

</mosaic_0001>

<llo_original>
// kernel: tpu_custom_call.1
$region0: #{tpu_custom_call.1}
  #allocation0 [shape = 'u32[]', space=smem, size = 0x4, offset = 0x4, fixed_abs, tag = 'smem constant byte address 0x4 - core index']
  #allocation1 [shape = 'u32[144,128]{1,0:T(1,128)}', space=vmem, size = 0x12000, scoped, tag = 'internal scratch']
  #allocation2 [shape = 'f32[3,128]{1,0:T(4,128)}', space=vmem, size = 0x800, scoped, tag = 'scratch operand']
  #allocation3 [shape = 'f32[3,128]{1,0:T(4,128)}', space=vmem, size = 0x800, scoped, tag = 'scratch operand']
  #allocation4 [shape = 'f32[3,128]{1,0:T(4,128)}', space=vmem, size = 0x800, scoped, tag = 'scratch operand']
  %s0 = inlined_call_operand.hbm [shape: f32[2,3,2,128], index: 0, kind: input, shape index: {}]
  %s1 = inlined_call_operand.hbm [shape: f32[2,3,2,128], index: 1, kind: input, shape index: {}]
  %s2 = inlined_call_operand.vmem [shape: f32[2,1,3,3,128], index: 2, kind: output, shape index: {}]
  %s3 = sld [smem:[#allocation0]]
  $region57: #{tpu_custom_call.1} parent=0
    _
  %s5 = ssub.s32 1, %s3
  %s6 = scalar_select 0, %s5, %s3
  $region1: #{tpu_custom_call.1} parent=0
    #allocation5 [shape = 'u8[6144]{0}', space=vmem, size = 0x1800, scoped, tag = 'input window, operand 0']
    #allocation6 [shape = 's32[2]{0}', space=sflag, size = 0x8, scoped, tag = 'scoped memory for tpu_custom_call.1']
    #allocation7 [shape = 'u8[6144]{0}', space=vmem, size = 0x1800, scoped, tag = 'input window, operand 1']
    #allocation8 [shape = 's32[2]{0}', space=sflag, size = 0x8, scoped, tag = 'scoped memory for tpu_custom_call.1']
    %7 = vsyncpa [#allocation6], 0
    %s8 = scalar_lea.sflag [#allocation6], 1
    %9 = vsyncpa %s8, 0
    %10 = vsyncpa [#allocation8], 0
    %s11 = scalar_lea.sflag [#allocation8], 1
    %12 = vsyncpa %s11, 0
    loop: start=0, step=1, limit=4
    $region2: #{tpu_custom_call.1} parent=1 // loop_pre_header
      _
    $region3: #{tpu_custom_call.1} parent=1 // loop_header
      %s14 = sphi 0, %s18
      %p15 = scmp.ge.s32.totalorder %s14, 4
      %s21 = sphi 0, %s40
      %s22 = sphi 0, %s36
      %s23 = sphi 0, %s32
      %s24 = sphi 0, %s21
      %s25 = sphi 0, %s22
      %s26 = sphi 0, %s23
      %s27 = sphi 0, %s24
      %s28 = sphi 0, %s25
      %s29 = sphi 0, %s26
      %s51 = sphi 0, %s53
      %s54 = sphi 0, %s51
      %s55 = sphi 0, %s54
      %s71 = sphi 0, %s55
      %s85 = sphi 0, %s87
      %s88 = sphi 0, %s85
      %s89 = sphi 0, %s88
      %s105 = sphi 0, %s89
      %s113 = sphi 0, %s115
      %s116 = sphi 0, %s113
      %s117 = sphi 0, %s116
      %s133 = sphi 0, %s117
    $region4: #{tpu_custom_call.1} parent=1 // loop_header_branch
      %17 = sbr.rel (%p15) target = $region8
    $region5: #{tpu_custom_call.1} parent=1 // loop_body
      %s19 = ssub.s32 %s14, 1
      %s20 = ssub.s32 %s14, 2
      %s30 = sadd.s32 1, %s23
      %p31 = scmp.ge.s32.totalorder %s30, 1
      %s32 = scalar_select %p31, 0, %s30
      %s33 = sadd.s32 1, %s22
      %s34 = scalar_select %p31, %s33, %s22
      %p35 = scmp.ge.s32.totalorder %s34, 1
      %s36 = scalar_select %p35, 0, %s34
      %s37 = sadd.s32 1, %s21
      %s38 = scalar_select %p35, %s37, %s21
      %p39 = scmp.ge.s32.totalorder %s38, 2
      %s40 = scalar_select %p39, 0, %s38
      %s41 = sadd.s32 %s22, %s23
      %p42 = scmp.lt.s32.totalorder %s41, 0
      %s43 = scalar_select %p42, %s41, 0
      %s44 = sadd.s32 %s36, %s32
      %p45 = scmp.lt.s32.totalorder %s44, 0
      %s46 = scalar_select %p45, %s44, 0
      %s47 = ssub.s32 %s21, %s40
      %s48 = ssub.s32 %s43, %s46
      %s49 = sor.u32 %s47, %s48
      %p50 = scmp.eq.s32.totalorder %s49, 0
      %s52 = sadd.s32 %s51, 1
      %s53 = scalar_select %p50, %s51, %s52
      %p56 = pneg %p50
      %p57 = scmp.eq.s32.totalorder %s14, 1
      %p58 = por %p56, %p57
      %p59 = scmp.ne.s32.totalorder %s51, %s54
      %p60 = scmp.eq.s32.totalorder %s14, 0
      %p61 = por %p59, %p60
      %p62 = scmp.ne.s32.totalorder %s51, %s54
      %p63 = scmp.eq.s32.totalorder %s19, 1
      %p64 = por %p62, %p63
      %p65 = scmp.ne.s32.totalorder %s54, %s55
      %p66 = scmp.eq.s32.totalorder %s19, 0
      %p67 = por %p65, %p66
      %p68 = scmp.ne.s32.totalorder %s54, %s55
      %p69 = scmp.eq.s32.totalorder %s20, 1
      %p70 = por %p68, %p69
      %p72 = scmp.ne.s32.totalorder %s55, %s71
      %p73 = scmp.eq.s32.totalorder %s20, 0
      %p74 = por %p72, %p73
      %s75 = sadd.s32 %s22, %s23
      %p76 = scmp.lt.s32.totalorder %s75, 0
      %s77 = scalar_select %p76, %s75, 0
      %s78 = sadd.s32 %s36, %s32
      %p79 = scmp.lt.s32.totalorder %s78, 0
      %s80 = scalar_select %p79, %s78, 0
      %s81 = ssub.s32 %s21, %s40
      %s82 = ssub.s32 %s77, %s80
      %s83 = sor.u32 %s81, %s82
      %p84 = scmp.eq.s32.totalorder %s83, 0
      %s86 = sadd.s32 %s85, 1
      %s87 = scalar_select %p84, %s85, %s86
      %p90 = pneg %p84
      %p91 = scmp.eq.s32.totalorder %s14, 1
      %p92 = por %p90, %p91
      %p93 = scmp.ne.s32.totalorder %s85, %s88
      %p94 = scmp.eq.s32.totalorder %s14, 0
      %p95 = por %p93, %p94
      %p96 = scmp.ne.s32.totalorder %s85, %s88
      %p97 = scmp.eq.s32.totalorder %s19, 1
      %p98 = por %p96, %p97
      %p99 = scmp.ne.s32.totalorder %s88, %s89
      %p100 = scmp.eq.s32.totalorder %s19, 0
      %p101 = por %p99, %p100
      %p102 = scmp.ne.s32.totalorder %s88, %s89
      %p103 = scmp.eq.s32.totalorder %s20, 1
      %p104 = por %p102, %p103
      %p106 = scmp.ne.s32.totalorder %s89, %s105
      %p107 = scmp.eq.s32.totalorder %s20, 0
      %p108 = por %p106, %p107
      %s109 = ssub.s32 %s21, %s40
      %s110 = ssub.s32 %s22, %s36
      %s111 = sor.u32 %s109, %s110
      %p112 = scmp.eq.s32.totalorder %s111, 0
      %s114 = sadd.s32 %s113, 1
      %s115 = scalar_select %p112, %s113, %s114
      %p118 = pneg %p112
      %p119 = scmp.eq.s32.totalorder %s14, 1
      %p120 = por %p118, %p119
      %p121 = scmp.ne.s32.totalorder %s113, %s116
      %p122 = scmp.eq.s32.totalorder %s14, 0
      %p123 = por %p121, %p122
      %p124 = scmp.ne.s32.totalorder %s113, %s116
      %p125 = scmp.eq.s32.totalorder %s19, 1
      %p126 = por %p124, %p125
      %p127 = scmp.ne.s32.totalorder %s116, %s117
      %p128 = scmp.eq.s32.totalorder %s19, 0
      %p129 = por %p127, %p128
      %p130 = scmp.ne.s32.totalorder %s116, %s117
      %p131 = scmp.eq.s32.totalorder %s20, 1
      %p132 = por %p130, %p131
      %p134 = scmp.ne.s32.totalorder %s117, %s133
      %p135 = scmp.eq.s32.totalorder %s20, 0
      %p136 = por %p134, %p135
      %p137 = scmp.le.s32.totalorder 1, %s14
      %p138 = scmp.lt.s32.totalorder %s14, 3
      %p139 = pnand %p137, %p138
      %p140 = pneg %p139
      // Predicated region
      $region9: #{tpu_custom_call.1} parent=5 // pred_check
        _
      $region10: #{tpu_custom_call.1} parent=5 // pred_check_branch
        %142 = sbr.rel (%p139) target = $region12
      $region11: #{tpu_custom_call.1} parent=5 // pred_region
        %s143 = ssub.s32 %s14, 1
      $region12: #{tpu_custom_call.1} parent=5 // pred_fallthru
        _
      %p144 = scmp.lt.s32.totalorder %s14, 2
      // Predicated region
      $region13: #{tpu_custom_call.1} parent=5 // pred_check
        %p145 = pneg %p144
      $region14: #{tpu_custom_call.1} parent=5 // pred_check_branch
        %147 = sbr.rel (%p145) target = $region16
      $region15: #{tpu_custom_call.1} parent=5 // pred_region
        // Predicated region
        $region17: #{tpu_custom_call.1} parent=15 // pred_check
          %p148 = pneg %p61
        $region18: #{tpu_custom_call.1} parent=15 // pred_check_branch
          %150 = sbr.rel (%p148) target = $region20
        $region19: #{tpu_custom_call.1} parent=15 // pred_region
          %s151 = sand.u32 %s51, 1
          %s152 = scalar_lea.sflag [#allocation6], %s151
          %s153 = sand.u32 %s51, 1
          %s154 = smul.addr %s153, 6
          %s155 = scalar_lea.vmem [#allocation5], %s154
          %s156 = sadd.s32 %s22, %s23
          %p157 = scmp.lt.s32.totalorder %s156, 0
          %s158 = scalar_select %p157, %s156, 0
          %s160 = ssub.s32 96, 96
          %161 = vsyncadd %s152, %s160
          %s162 = smul.addr %s21, 3
          %s163 = sadd.s32 %s158, %s162
          %s164 = smul.addr %s163, 32
          %s165 = scalar_lea.hbm %s0, %s164
          %s166 = sshll.u32 %s155, 4
          %s167 = int_to_ptr.vmem [resolvable:$true] %s166
          %172 = dma.hbm_to_vmem [thread:$0]  %s165, 96, %s167, %s152, 32, 32, 2
        $region20: #{tpu_custom_call.1} parent=15 // pred_fallthru
          _
        // Predicated region
        $region21: #{tpu_custom_call.1} parent=15 // pred_check
          %p173 = pneg %p95
        $region22: #{tpu_custom_call.1} parent=15 // pred_check_branch
          %175 = sbr.rel (%p173) target = $region24
        $region23: #{tpu_custom_call.1} parent=15 // pred_region
          %s176 = sand.u32 %s85, 1
          %s177 = scalar_lea.sflag [#allocation8], %s176
          %s178 = sand.u32 %s85, 1
          %s179 = smul.addr %s178, 6
          %s180 = scalar_lea.vmem [#allocation7], %s179
          %s181 = sadd.s32 %s22, %s23
          %p182 = scmp.lt.s32.totalorder %s181, 0
          %s183 = scalar_select %p182, %s181, 0
          %s185 = ssub.s32 96, 96
          %186 = vsyncadd %s177, %s185
          %s187 = smul.addr %s21, 3
          %s188 = sadd.s32 %s183, %s187
          %s189 = smul.addr %s188, 32
          %s190 = scalar_lea.hbm %s1, %s189
          %s191 = sshll.u32 %s180, 4
          %s192 = int_to_ptr.vmem [resolvable:$true] %s191
          %197 = dma.hbm_to_vmem [thread:$0]  %s190, 96, %s192, %s177, 32, 32, 2
        $region24: #{tpu_custom_call.1} parent=15 // pred_fallthru
          _
      $region16: #{tpu_custom_call.1} parent=5 // pred_fallthru
        _
      %p198 = scmp.le.s32.totalorder 1, %s14
      %p199 = scmp.lt.s32.totalorder %s14, 3
      %p200 = pnand %p198, %p199
      %p201 = pneg %p200
      // Predicated region
      $region25: #{tpu_custom_call.1} parent=5 // pred_check
        _
      $region26: #{tpu_custom_call.1} parent=5 // pred_check_branch
        %203 = sbr.rel (%p200) target = $region28
      $region27: #{tpu_custom_call.1} parent=5 // pred_region
        %s204 = ssub.s32 %s14, 1
        %s205 = sand.u32 %s54, 1
        %s206 = scalar_lea.sflag [#allocation6], %s205
        %s207 = sand.u32 %s54, 1
        %s208 = smul.addr %s207, 6
        %s209 = scalar_lea.vmem [#allocation5], %s208
        // Predicated region
        $region29: #{tpu_custom_call.1} parent=27 // pred_check
          %p210 = pneg %p67
        $region30: #{tpu_custom_call.1} parent=27 // pred_check_branch
          %212 = sbr.rel (%p210) target = $region32
        $region31: #{tpu_custom_call.1} parent=27 // pred_region
          %213 = dma.done %s206, 96
        $region32: #{tpu_custom_call.1} parent=27 // pred_fallthru
          _
        %s214 = sand.u32 %s88, 1
        %s215 = scalar_lea.sflag [#allocation8], %s214
        %s216 = sand.u32 %s88, 1
        %s217 = smul.addr %s216, 6
        %s218 = scalar_lea.vmem [#allocation7], %s217
        // Predicated region
        $region33: #{tpu_custom_call.1} parent=27 // pred_check
          %p219 = pneg %p101
        $region34: #{tpu_custom_call.1} parent=27 // pred_check_branch
          %221 = sbr.rel (%p219) target = $region36
        $region35: #{tpu_custom_call.1} parent=27 // pred_region
          %222 = dma.done %s215, 96
        $region36: #{tpu_custom_call.1} parent=27 // pred_fallthru
          _
        %s223 = sand.u32 %s54, 1
        %s224 = scalar_lea.sflag [#allocation6], %s223
        %s225 = sand.u32 %s54, 1
        %s226 = smul.addr %s225, 6
        %s227 = scalar_lea.vmem [#allocation5], %s226
        %p228 = pneg %p67
        %p229 = pneg %p64
        %s230 = sand.u32 %s88, 1
        %s231 = scalar_lea.sflag [#allocation8], %s230
        %s232 = sand.u32 %s88, 1
        %s233 = smul.addr %s232, 6
        %s234 = scalar_lea.vmem [#allocation7], %s233
        %p235 = pneg %p101
        %p236 = pneg %p98
        %p237 = pneg %p129
        %p238 = pneg %p126
        %p239 = scmp.lt.s32.totalorder %s24, 1
        %s240 = scalar_select %p239, %s24, 1
        %p241 = scmp.lt.s32.totalorder %s25, 0
        %s242 = scalar_select %p241, %s25, 0
        %s243 = smul.addr %s242, 3
        %s244 = smul.addr %s240, 3
        %s245 = sadd.s32 %s243, %s244
        %s246 = smul.addr %s245, 4
        %s247 = scalar_lea.vmem %s2, %s246
        %s248 = sadd.s32 %s25, %s26
        %p249 = scmp.lt.s32.totalorder %s248, 0
        %s250 = scalar_select %p249, %s248, 0
        %s251 = sadd.s32 %s25, %s26
        %p252 = scmp.lt.s32.totalorder %s251, 0
        %s253 = scalar_select %p252, %s251, 0
        %p254 = scmp.lt.s32.totalorder %s24, 1
        %s255 = scalar_select %p254, %s24, 1
        %p256 = scmp.lt.s32.totalorder %s25, 0
        %s257 = scalar_select %p256, %s25, 0
        %s258 = smul.addr %s257, 3
        %s259 = smul.addr %s255, 3
        %s260 = sadd.s32 %s258, %s259
        %s261 = smul.addr %s260, 4
        %s262 = scalar_lea.vmem %s2, %s261
        %p263 = scmp.eq.s32.totalorder %s26, 0
        // Predicated region
        $region37: #{tpu_custom_call.1} parent=27 // pred_check
          %p264 = pneg %p263
        $region38: #{tpu_custom_call.1} parent=27 // pred_check_branch
          %266 = sbr.rel (%p264) target = $region40
        $region39: #{tpu_custom_call.1} parent=27 // pred_region
          %267 = vst [vmem:[#allocation2] sm:$0x7] 0.0
          %268 = vst [vmem:[#allocation3] sm:$0x7] 0.0
          %269 = vst [vmem:[#allocation4] sm:$0x7] 0.0
        $region40: #{tpu_custom_call.1} parent=27 // pred_fallthru
          _
        %v270 = vld [vmem:[%s209] sm:$0x3]
        %v271 = vld [vmem:[%s209 + $0x2] sm:$0x3]
        %v272 = vld [vmem:[%s209 + $0x4] sm:$0x3]
        %v273 = vld [vmem:[%s218] sm:$0x3]
        %v274 = vld [vmem:[%s218 + $0x2] sm:$0x3]
        %v275 = vld [vmem:[%s218 + $0x4] sm:$0x3]
        %v276 = vsub.f32 %v270, %v273
        %v277 = vsub.f32 %v271, %v274
        %v278 = vsub.f32 %v272, %v275
        %v279 = vmul.f32 %v276, %v276
        %v280 = vmul.f32 %v277, %v277
        %v281 = vmul.f32 %v278, %v278
        %v282 = vld [vmem:[#allocation2] sm:$0x7]
        %v283 = vmul.f32 %v279, %v273
        %v284 = vmul.f32 %v280, %v274
        %v285 = vmul.f32 %v281, %v275
        %vm286 = vcmask 1041408
        %v287 = vsel %vm286, %v283, 0.0
        %v288 = vrot.slane %v287, 4
        %v289 = vadd.f32 %v287, %v288
        %v290 = vrot.slane %v289, 2
        %v291 = vadd.f32 %v289, %v290
        %v292 = vrot.slane %v291, 1
        %v293 = vadd.f32 %v291, %v292
        %v294 = vsel %vm286, %v284, 0.0
        %v295 = vrot.slane %v294, 4
        %v296 = vadd.f32 %v294, %v295
        %v297 = vrot.slane %v296, 2
        %v298 = vadd.f32 %v296, %v297
        %v299 = vrot.slane %v298, 1
        %v300 = vadd.f32 %v298, %v299
        %v301 = vsel %vm286, %v285, 0.0
        %v302 = vrot.slane %v301, 4
        %v303 = vadd.f32 %v301, %v302
        %v304 = vrot.slane %v303, 2
        %v305 = vadd.f32 %v303, %v304
        %v306 = vrot.slane %v305, 1
        %v307 = vadd.f32 %v305, %v306
        %vm311 = vcmask 1041409
        %v312 = vsel %vm311, %v300, %v293
        %vm313 = vcmask 1042434
        %v314 = vsel %vm313, %v307, %v312
        %v316 = vadd.f32 %v282, %v314
        %317 = vst [vmem:[#allocation2] sm:$0x7] %v316
        %v318 = vld [vmem:[#allocation3] sm:$0x7]
        %v319 = vsel %vm286, %v279, 0.0
        %v320 = vrot.slane %v319, 4
        %v321 = vadd.f32 %v319, %v320
        %v322 = vrot.slane %v321, 2
        %v323 = vadd.f32 %v321, %v322
        %v324 = vrot.slane %v323, 1
        %v325 = vadd.f32 %v323, %v324
        %v326 = vsel %vm286, %v280, 0.0
        %v327 = vrot.slane %v326, 4
        %v328 = vadd.f32 %v326, %v327
        %v329 = vrot.slane %v328, 2
        %v330 = vadd.f32 %v328, %v329
        %v331 = vrot.slane %v330, 1
        %v332 = vadd.f32 %v330, %v331
        %v333 = vsel %vm286, %v281, 0.0
        %v334 = vrot.slane %v333, 4
        %v335 = vadd.f32 %v333, %v334
        %v336 = vrot.slane %v335, 2
        %v337 = vadd.f32 %v335, %v336
        %v338 = vrot.slane %v337, 1
        %v339 = vadd.f32 %v337, %v338
        %v343 = vsel %vm311, %v332, %v325
        %v344 = vsel %vm313, %v339, %v343
        %v346 = vadd.f32 %v318, %v344
        %347 = vst [vmem:[#allocation3] sm:$0x7] %v346
        %v348 = vld [vmem:[#allocation4] sm:$0x7]
        %v349 = vsel %vm286, %v273, 0.0
        %v350 = vrot.slane %v349, 4
        %v351 = vadd.f32 %v349, %v350
        %v352 = vrot.slane %v351, 2
        %v353 = vadd.f32 %v351, %v352
        %v354 = vrot.slane %v353, 1
        %v355 = vadd.f32 %v353, %v354
        %v356 = vsel %vm286, %v274, 0.0
        %v357 = vrot.slane %v356, 4
        %v358 = vadd.f32 %v356, %v357
        %v359 = vrot.slane %v358, 2
        %v360 = vadd.f32 %v358, %v359
        %v361 = vrot.slane %v360, 1
        %v362 = vadd.f32 %v360, %v361
        %v363 = vsel %vm286, %v275, 0.0
        %v364 = vrot.slane %v363, 4
        %v365 = vadd.f32 %v363, %v364
        %v366 = vrot.slane %v365, 2
        %v367 = vadd.f32 %v365, %v366
        %v368 = vrot.slane %v367, 1
        %v369 = vadd.f32 %v367, %v368
        %v373 = vsel %vm311, %v362, %v355
        %v374 = vsel %vm313, %v369, %v373
        %v376 = vadd.f32 %v348, %v374
        %377 = vst [vmem:[#allocation4] sm:$0x7] %v376
        // Predicated region
        $region41: #{tpu_custom_call.1} parent=27 // pred_check
          %p378 = pneg %p263
        $region42: #{tpu_custom_call.1} parent=27 // pred_check_branch
          %380 = sbr.rel (%p378) target = $region44
        $region43: #{tpu_custom_call.1} parent=27 // pred_region
          %v381 = vld [vmem:[#allocation2] sm:$0x7]
          %382 = vst [vmem:[%s262] sm:$0x7] %v381
          %v383 = vld [vmem:[#allocation3] sm:$0x7]
          %s384 = scalar_lea.vmem %s262, 4
          %385 = vst [vmem:[%s384] sm:$0x7] %v383
          %v386 = vld [vmem:[#allocation4] sm:$0x7]
          %s387 = scalar_lea.vmem %s262, 8
          %388 = vst [vmem:[%s387] sm:$0x7] %v386
        $region44: #{tpu_custom_call.1} parent=27 // pred_fallthru
          _
        %p389 = scmp.lt.s32.totalorder %s24, 1
        %s390 = scalar_select %p389, %s24, 1
        %p391 = scmp.lt.s32.totalorder %s25, 0
        %s392 = scalar_select %p391, %s25, 0
        %s393 = smul.addr %s392, 3
        %s394 = smul.addr %s390, 3
        %s395 = sadd.s32 %s393, %s394
        %s396 = smul.addr %s395, 4
        %s397 = scalar_lea.vmem %s2, %s396
        // Predicated region
        $region45: #{tpu_custom_call.1} parent=27 // pred_check
          %p398 = pneg %p126
        $region46: #{tpu_custom_call.1} parent=27 // pred_check_branch
          %400 = sbr.rel (%p398) target = $region48
        $region47: #{tpu_custom_call.1} parent=27 // pred_region
          _
        $region48: #{tpu_custom_call.1} parent=27 // pred_fallthru
          _
      $region28: #{tpu_custom_call.1} parent=5 // pred_fallthru
        _
      %p401 = scmp.le.s32.totalorder 2, %s14
      // Predicated region
      $region49: #{tpu_custom_call.1} parent=5 // pred_check
        %p402 = pneg %p401
      $region50: #{tpu_custom_call.1} parent=5 // pred_check_branch
        %404 = sbr.rel (%p402) target = $region52
      $region51: #{tpu_custom_call.1} parent=5 // pred_region
        %s405 = ssub.s32 %s14, 2
        // Predicated region
        $region53: #{tpu_custom_call.1} parent=51 // pred_check
          %p406 = pneg %p132
        $region54: #{tpu_custom_call.1} parent=51 // pred_check_branch
          %408 = sbr.rel (%p406) target = $region56
        $region55: #{tpu_custom_call.1} parent=51 // pred_region
          %p409 = scmp.lt.s32.totalorder %s27, 1
          %s410 = scalar_select %p409, %s27, 1
          %p411 = scmp.lt.s32.totalorder %s28, 0
          %s412 = scalar_select %p411, %s28, 0
          %s413 = smul.addr %s412, 3
          %s414 = smul.addr %s410, 3
          %s415 = sadd.s32 %s413, %s414
          %s416 = smul.addr %s415, 4
          %s417 = scalar_lea.vmem %s2, %s416
        $region56: #{tpu_custom_call.1} parent=51 // pred_fallthru
          _
      $region52: #{tpu_custom_call.1} parent=5 // pred_fallthru
        _
    $region6: #{tpu_custom_call.1} parent=1 // loop_footer
      %s18 = sadd.s32 1, %s14
    $region7: #{tpu_custom_call.1} parent=1 // loop_footer_branch
      %13 = sbr.rel target = $region3
    $region8: #{tpu_custom_call.1} parent=1 // loop_exit
      _
    %418 = vsyncpa [#allocation6], 1
    %s419 = scalar_lea.sflag [#allocation6], 1
    %420 = vsyncpa %s419, 1
    %421 = vsyncpa [#allocation8], 1
    %s422 = scalar_lea.sflag [#allocation8], 1
    %423 = vsyncpa %s422, 1

</llo_original>
